<compile_context>
chip_gen: v5e
topology: v5e:2x2
jax: 0.10.0
libtpu: 0.0.40
codegen_flags: <defaults>
</compile_context>

<pallas_src>
import numpy as np

import jax
import jax.numpy as jnp
from jax import lax
from jax.experimental import pallas as pl
from jax.experimental.pallas import tpu as pltpu


def make_agent_dqn_kernel(T, n_pipe, matmul_dtype=jnp.float32):
    """Kernel body for fixed seq-len T and pipe depth n_pipe."""
    md = matmul_dtype

    def kernel(*refs):
        (terr_ref, obs_ref, w_ih_ref, w_hh_ref, b_lstm_ref,
         w_fc_ref, b_fc_ref, w0_obs_ref, w0_enc_ref, b0_ref) = refs[:10]
        tail_refs = refs[10:10 + 2 * (n_pipe - 1)]
        out_ref = refs[-1]

        B = obs_ref.shape[0]              # padded batch (multiple of 8)
        H = w_hh_ref.shape[0]

        # ---- LSTM input projection hoisted out of the recurrence ----
        # (T*B, Din) @ (Din, 4H): one MXU op + one bias add for all T steps.
        gates_x = (jnp.dot(terr_ref[...].astype(md), w_ih_ref[...].astype(md),
                           preferred_element_type=jnp.float32)
                   + b_lstm_ref[...])     # (T*B, 4H)

        w_hh = w_hh_ref[...].astype(md)   # (H, 4H), loaded/cast once

        h = jnp.zeros((B, H), jnp.float32)
        c = jnp.zeros((B, H), jnp.float32)
        # Fully unrolled time loop (T is a compile-time constant): equivalent
        # to lax.fori_loop(0, T, step, ..., unroll=True) but with static,
        # sublane-aligned row slices of gates_x.
        for t in range(T):
            gates = (gates_x[t * B:(t + 1) * B]
                     + jnp.dot(h.astype(md), w_hh,
                               preferred_element_type=jnp.float32))  # (B, 4H)
            sg = jax.nn.sigmoid(gates)    # one full-vreg EUP op (covers i,f,o)
            i = sg[:, 0 * H:1 * H]
            f = sg[:, 1 * H:2 * H]
            o = sg[:, 3 * H:4 * H]
            g = jnp.tanh(gates[:, 2 * H:3 * H])
            c = f * c + i * g
            h = o * jnp.tanh(c)

        # encoder.fc = Sequential(ReLU, Linear); PyTorch keeps only out[-1],
        # so only the last hidden state is projected.
        enc = (jnp.dot(jnp.maximum(h, 0.0).astype(md), w_fc_ref[...].astype(md),
                       preferred_element_type=jnp.float32)
               + b_fc_ref[...])           # (B, enc_out)

        # First pipe layer with the concat folded into two partial dots:
        #   cat([obs, enc], 1) @ W0 + b0 == obs @ W0[:in] + enc @ W0[in:] + b0
        x = (jnp.dot(obs_ref[...].astype(md), w0_obs_ref[...].astype(md),
                     preferred_element_type=jnp.float32)
             + jnp.dot(enc.astype(md), w0_enc_ref[...].astype(md),
                       preferred_element_type=jnp.float32)
             + b0_ref[...])
        if n_pipe > 1:
            x = jnp.maximum(x, 0.0)

        # Remaining pipe layers ([Linear, ReLU]* + final Linear padded to 128).
        for li in range(n_pipe - 1):
            w = tail_refs[2 * li][...].astype(md)
            bb = tail_refs[2 * li + 1][...]
            x = jnp.dot(x.astype(md), w, preferred_element_type=jnp.float32) + bb
            if li < n_pipe - 2:
                x = jnp.maximum(x, 0.0)

        out_ref[...] = x

    return kernel


def agent_dqn_forward(observation, terrains, params, n_actions,
                      matmul_dtype=jnp.float32):
    """observation: (B, input_size) f32; terrains: (T, B, enc_in) f32."""
    T, B, Din = terrains.shape
    input_size = observation.shape[1]
    H = params["w_hh"].shape[0]
    pipe = [(jnp.asarray(w), jnp.asarray(b)) for (w, b) in params["pipe"]]
    n_pipe = len(pipe)

    # --- batch padding: fill all 8 f32 sublanes per vreg ---
    B_pad = max(8, -(-B // 8) * 8)
    if B_pad != B:
        terrains = jnp.pad(terrains, ((0, 0), (0, B_pad - B), (0, 0)))
        observation = jnp.pad(observation, ((0, B_pad - B), (0, 0)))
    terr_flat = terrains.reshape(T * B_pad, Din)   # free reshape outside kernel

    # --- lane-dense output: pad last layer columns up to a multiple of 128 ---
    n_pad = -(-n_actions // 128) * 128
    w_last, b_last = pipe[-1]
    pipe[-1] = (jnp.pad(w_last, ((0, 0), (0, n_pad - n_actions))),
                jnp.pad(b_last, ((0, 0), (0, n_pad - n_actions))))

    # --- split first pipe layer to eliminate the in-kernel concat ---
    w0, b0 = pipe[0]
    w0_obs, w0_enc = w0[:input_size], w0[input_size:]

    inputs = [terr_flat, observation,
              params["w_ih"], params["w_hh"], params["b_lstm"],
              params["w_fc"], params["b_fc"],
              w0_obs, w0_enc, b0]
    for (w, bb) in pipe[1:]:
        inputs += [w, bb]

    # Advisory cost estimate so the tiny custom call is scheduled sensibly.
    enc_out = params["w_fc"].shape[1]
    flops = 2 * T * B_pad * Din * 4 * H            # hoisted input projection
    flops += T * 2 * B_pad * H * 4 * H             # recurrent h @ w_hh
    flops += T * B_pad * 12 * H                    # gate / state elementwise
    flops += 2 * B_pad * H * enc_out               # encoder fc
    flops += 2 * B_pad * w0_obs.shape[0] * w0_obs.shape[1]
    flops += 2 * B_pad * w0_enc.shape[0] * w0_enc.shape[1]
    for (w, _) in pipe[1:]:
        flops += 2 * B_pad * w.shape[0] * w.shape[1]
    transcendentals = T * B_pad * 6 * H            # sigmoid(4H) + 2 x tanh(H)
    bytes_accessed = int(sum(int(np.prod(a.shape)) * a.dtype.itemsize
                             for a in inputs) + B_pad * n_pad * 4)

    kernel = make_agent_dqn_kernel(T, n_pipe, matmul_dtype)
    vmem = pl.BlockSpec(memory_space=pltpu.MemorySpace.VMEM)
    fn = pl.pallas_call(
        kernel,
        out_shape=jax.ShapeDtypeStruct((B_pad, n_pad), jnp.float32),
        in_specs=[vmem] * len(inputs),
        out_specs=vmem,
        cost_estimate=pl.CostEstimate(flops=flops,
                                      transcendentals=transcendentals,
                                      bytes_accessed=bytes_accessed),
    )
    out = fn(*inputs)
    return out[:B, :n_actions]


def reference_forward(observation, terrains, params):
    """Pure-JAX reference mirroring the PyTorch semantics."""
    T, B, _ = terrains.shape
    H = params["w_hh"].shape[0]
    h = jnp.zeros((B, H), jnp.float32)
    c = jnp.zeros((B, H), jnp.float32)
    for t in range(T):
        gates = terrains[t] @ params["w_ih"] + h @ params["w_hh"] + params["b_lstm"]
        i = jax.nn.sigmoid(gates[:, 0 * H:1 * H])
        f = jax.nn.sigmoid(gates[:, 1 * H:2 * H])
        g = jnp.tanh(gates[:, 2 * H:3 * H])
        o = jax.nn.sigmoid(gates[:, 3 * H:4 * H])
        c = f * c + i * g
        h = o * jnp.tanh(c)
    enc = jnp.maximum(h, 0.0) @ params["w_fc"] + params["b_fc"]
    x = jnp.concatenate([observation, enc], axis=1)
    for li, (w, bb) in enumerate(params["pipe"]):
        x = x @ w + bb
        if li < len(params["pipe"]) - 1:
            x = jnp.maximum(x, 0.0)
    return x


def init_params(key, enc_in, enc_out, enc_hidden, input_size, n_actions,
                hidden_layers):
    """Deterministic synthetic parameters (shapes match the PyTorch module)."""
    keys = iter(jax.random.split(key, 64))
    s = 0.1

    def rnd(shape):
        return jax.random.normal(next(keys), shape, jnp.float32) * s

    H = enc_hidden
    params = {
        # LSTM weights stored transposed: (in_dim, 4H) / (H, 4H)
        "w_ih": rnd((enc_in, 4 * H)),
        "w_hh": rnd((H, 4 * H)),
        # b_ih + b_hh pre-summed
        "b_lstm": rnd((1, 4 * H)),
        # encoder fc Linear(hidden -> enc_out)
        "w_fc": rnd((H, enc_out)),
        "b_fc": rnd((1, enc_out)),
    }

    pipe = []
    layer_size = input_size + enc_out
    for layer_type, next_size in hidden_layers:
        if layer_type.lower() == "linear":
            pipe.append((rnd((layer_size, next_size)), rnd((1, next_size))))
            layer_size = next_size
        # TODO(synk): the 'GRU' branch is a no-op in the PyTorch module too.
    pipe.append((rnd((layer_size, n_actions)), rnd((1, n_actions))))
    params["pipe"] = pipe
    return params


if __name__ == "__main__":
    # Small configuration consistent with the module's constructor.
    ENC_IN, ENC_OUT, ENC_HID = 4, 8, 32
    INPUT_SIZE, N_ACTIONS = 16, 4
    HIDDEN_LAYERS = [("linear", 32), ("linear", 32)]
    B, T = 2, 8

    root = jax.random.PRNGKey(0)
    kp, ko, kt = jax.random.split(root, 3)

    params = init_params(kp, ENC_IN, ENC_OUT, ENC_HID, INPUT_SIZE,
                         N_ACTIONS, HIDDEN_LAYERS)

    # batch = [(observation_b, terrain_b) for b in range(B)] packed as:
    observation = jax.random.normal(ko, (B, INPUT_SIZE), jnp.float32)
    terrains = jax.random.normal(kt, (T, B, ENC_IN), jnp.float32)

    out = agent_dqn_forward(observation, terrains, params, N_ACTIONS)
    out = jax.block_until_ready(out)

    ref = reference_forward(observation, terrains, params)
    np.testing.assert_allclose(np.asarray(out), np.asarray(ref),
                               rtol=1e-5, atol=1e-5)

    assert out.shape == (B, N_ACTIONS)
    print("KERNEL_OK")
</pallas_src>

<mosaic_0001>
module attributes {stable_mosaic.version = 11 : i64} {
  func.func @kernel(%arg0: memref<64x4xf32, #tpu.memory_space<vmem>>, %arg1: memref<8x16xf32, #tpu.memory_space<vmem>>, %arg2: memref<4x128xf32, #tpu.memory_space<vmem>>, %arg3: memref<32x128xf32, #tpu.memory_space<vmem>>, %arg4: memref<1x128xf32, #tpu.memory_space<vmem>>, %arg5: memref<32x8xf32, #tpu.memory_space<vmem>>, %arg6: memref<1x8xf32, #tpu.memory_space<vmem>>, %arg7: memref<16x32xf32, #tpu.memory_space<vmem>>, %arg8: memref<8x32xf32, #tpu.memory_space<vmem>>, %arg9: memref<1x32xf32, #tpu.memory_space<vmem>>, %arg10: memref<32x32xf32, #tpu.memory_space<vmem>>, %arg11: memref<1x32xf32, #tpu.memory_space<vmem>>, %arg12: memref<32x128xf32, #tpu.memory_space<vmem>>, %arg13: memref<1x128xf32, #tpu.memory_space<vmem>>, %arg14: memref<8x128xf32, #tpu.memory_space<vmem>>) attributes {dimension_semantics = [], scalar_prefetch = 0 : i64, scratch_operands = 0 : i64, tpu.core_type = #tpu.core_type<tc>} {
    %c0 = arith.constant 0 : index
    %c0_0 = arith.constant 0 : index
    %0 = vector.load %arg0[%c0, %c0_0] : memref<64x4xf32, #tpu.memory_space<vmem>>, vector<64x4xf32>
    %c0_1 = arith.constant 0 : index
    %c0_2 = arith.constant 0 : index
    %1 = vector.load %arg2[%c0_1, %c0_2] : memref<4x128xf32, #tpu.memory_space<vmem>>, vector<4x128xf32>
    %cst = arith.constant dense<0.000000e+00> : vector<64x128xf32>
    %2 = tpu.matmul %0, %1, %cst {dimension_numbers = #tpu.dot_dimension_numbers<[1], [0], [0], [1], [0, 0, 1, 1], [], []>} : vector<64x4xf32>, vector<4x128xf32>, vector<64x128xf32> -> vector<64x128xf32>
    %c0_3 = arith.constant 0 : index
    %c0_4 = arith.constant 0 : index
    %3 = vector.load %arg4[%c0_3, %c0_4] : memref<1x128xf32, #tpu.memory_space<vmem>>, vector<1x128xf32>
    %4 = vector.broadcast %3 : vector<1x128xf32> to vector<64x128xf32>
    %5 = arith.addf %2, %4 : vector<64x128xf32>
    %c0_5 = arith.constant 0 : index
    %c0_6 = arith.constant 0 : index
    %6 = vector.load %arg3[%c0_5, %c0_6] : memref<32x128xf32, #tpu.memory_space<vmem>>, vector<32x128xf32>
    %cst_7 = arith.constant 0.000000e+00 : f32
    %7 = vector.broadcast %cst_7 : f32 to vector<8x32xf32>
    %cst_8 = arith.constant 0.000000e+00 : f32
    %8 = vector.broadcast %cst_8 : f32 to vector<8x32xf32>
    %9 = vector.extract_strided_slice %5 {offsets = [0, 0], sizes = [8, 128], strides = [1, 1]} : vector<64x128xf32> to vector<8x128xf32>
    %cst_9 = arith.constant dense<0.000000e+00> : vector<8x128xf32>
    %10 = tpu.matmul %7, %6, %cst_9 {dimension_numbers = #tpu.dot_dimension_numbers<[1], [0], [0], [1], [0, 0, 1, 1], [], []>} : vector<8x32xf32>, vector<32x128xf32>, vector<8x128xf32> -> vector<8x128xf32>
    %11 = arith.addf %9, %10 : vector<8x128xf32>
    %12 = arith.negf %11 : vector<8x128xf32>
    %13 = math.exp %12 : vector<8x128xf32>
    %cst_10 = arith.constant 1.000000e+00 : f32
    %14 = vector.broadcast %cst_10 : f32 to vector<8x128xf32>
    %15 = arith.addf %14, %13 : vector<8x128xf32>
    %16 = arith.divf %14, %15 : vector<8x128xf32>
    %17 = vector.extract_strided_slice %16 {offsets = [0, 0], sizes = [8, 32], strides = [1, 1]} : vector<8x128xf32> to vector<8x32xf32>
    %18 = vector.extract_strided_slice %16 {offsets = [0, 32], sizes = [8, 32], strides = [1, 1]} : vector<8x128xf32> to vector<8x32xf32>
    %19 = vector.extract_strided_slice %16 {offsets = [0, 96], sizes = [8, 32], strides = [1, 1]} : vector<8x128xf32> to vector<8x32xf32>
    %20 = vector.extract_strided_slice %11 {offsets = [0, 64], sizes = [8, 32], strides = [1, 1]} : vector<8x128xf32> to vector<8x32xf32>
    %21 = math.tanh %20 : vector<8x32xf32>
    %22 = arith.mulf %18, %8 : vector<8x32xf32>
    %23 = arith.mulf %17, %21 : vector<8x32xf32>
    %24 = arith.addf %22, %23 : vector<8x32xf32>
    %25 = math.tanh %24 : vector<8x32xf32>
    %26 = arith.mulf %19, %25 : vector<8x32xf32>
    %27 = vector.extract_strided_slice %5 {offsets = [8, 0], sizes = [8, 128], strides = [1, 1]} : vector<64x128xf32> to vector<8x128xf32>
    %cst_11 = arith.constant dense<0.000000e+00> : vector<8x128xf32>
    %28 = tpu.matmul %26, %6, %cst_11 {dimension_numbers = #tpu.dot_dimension_numbers<[1], [0], [0], [1], [0, 0, 1, 1], [], []>} : vector<8x32xf32>, vector<32x128xf32>, vector<8x128xf32> -> vector<8x128xf32>
    %29 = arith.addf %27, %28 : vector<8x128xf32>
    %30 = arith.negf %29 : vector<8x128xf32>
    %31 = math.exp %30 : vector<8x128xf32>
    %cst_12 = arith.constant 1.000000e+00 : f32
    %32 = vector.broadcast %cst_12 : f32 to vector<8x128xf32>
    %33 = arith.addf %32, %31 : vector<8x128xf32>
    %34 = arith.divf %32, %33 : vector<8x128xf32>
    %35 = vector.extract_strided_slice %34 {offsets = [0, 0], sizes = [8, 32], strides = [1, 1]} : vector<8x128xf32> to vector<8x32xf32>
    %36 = vector.extract_strided_slice %34 {offsets = [0, 32], sizes = [8, 32], strides = [1, 1]} : vector<8x128xf32> to vector<8x32xf32>
    %37 = vector.extract_strided_slice %34 {offsets = [0, 96], sizes = [8, 32], strides = [1, 1]} : vector<8x128xf32> to vector<8x32xf32>
    %38 = vector.extract_strided_slice %29 {offsets = [0, 64], sizes = [8, 32], strides = [1, 1]} : vector<8x128xf32> to vector<8x32xf32>
    %39 = math.tanh %38 : vector<8x32xf32>
    %40 = arith.mulf %36, %24 : vector<8x32xf32>
    %41 = arith.mulf %35, %39 : vector<8x32xf32>
    %42 = arith.addf %40, %41 : vector<8x32xf32>
    %43 = math.tanh %42 : vector<8x32xf32>
    %44 = arith.mulf %37, %43 : vector<8x32xf32>
    %45 = vector.extract_strided_slice %5 {offsets = [16, 0], sizes = [8, 128], strides = [1, 1]} : vector<64x128xf32> to vector<8x128xf32>
    %cst_13 = arith.constant dense<0.000000e+00> : vector<8x128xf32>
    %46 = tpu.matmul %44, %6, %cst_13 {dimension_numbers = #tpu.dot_dimension_numbers<[1], [0], [0], [1], [0, 0, 1, 1], [], []>} : vector<8x32xf32>, vector<32x128xf32>, vector<8x128xf32> -> vector<8x128xf32>
    %47 = arith.addf %45, %46 : vector<8x128xf32>
    %48 = arith.negf %47 : vector<8x128xf32>
    %49 = math.exp %48 : vector<8x128xf32>
    %cst_14 = arith.constant 1.000000e+00 : f32
    %50 = vector.broadcast %cst_14 : f32 to vector<8x128xf32>
    %51 = arith.addf %50, %49 : vector<8x128xf32>
    %52 = arith.divf %50, %51 : vector<8x128xf32>
    %53 = vector.extract_strided_slice %52 {offsets = [0, 0], sizes = [8, 32], strides = [1, 1]} : vector<8x128xf32> to vector<8x32xf32>
    %54 = vector.extract_strided_slice %52 {offsets = [0, 32], sizes = [8, 32], strides = [1, 1]} : vector<8x128xf32> to vector<8x32xf32>
    %55 = vector.extract_strided_slice %52 {offsets = [0, 96], sizes = [8, 32], strides = [1, 1]} : vector<8x128xf32> to vector<8x32xf32>
    %56 = vector.extract_strided_slice %47 {offsets = [0, 64], sizes = [8, 32], strides = [1, 1]} : vector<8x128xf32> to vector<8x32xf32>
    %57 = math.tanh %56 : vector<8x32xf32>
    %58 = arith.mulf %54, %42 : vector<8x32xf32>
    %59 = arith.mulf %53, %57 : vector<8x32xf32>
    %60 = arith.addf %58, %59 : vector<8x32xf32>
    %61 = math.tanh %60 : vector<8x32xf32>
    %62 = arith.mulf %55, %61 : vector<8x32xf32>
    %63 = vector.extract_strided_slice %5 {offsets = [24, 0], sizes = [8, 128], strides = [1, 1]} : vector<64x128xf32> to vector<8x128xf32>
    %cst_15 = arith.constant dense<0.000000e+00> : vector<8x128xf32>
    %64 = tpu.matmul %62, %6, %cst_15 {dimension_numbers = #tpu.dot_dimension_numbers<[1], [0], [0], [1], [0, 0, 1, 1], [], []>} : vector<8x32xf32>, vector<32x128xf32>, vector<8x128xf32> -> vector<8x128xf32>
    %65 = arith.addf %63, %64 : vector<8x128xf32>
    %66 = arith.negf %65 : vector<8x128xf32>
    %67 = math.exp %66 : vector<8x128xf32>
    %cst_16 = arith.constant 1.000000e+00 : f32
    %68 = vector.broadcast %cst_16 : f32 to vector<8x128xf32>
    %69 = arith.addf %68, %67 : vector<8x128xf32>
    %70 = arith.divf %68, %69 : vector<8x128xf32>
    %71 = vector.extract_strided_slice %70 {offsets = [0, 0], sizes = [8, 32], strides = [1, 1]} : vector<8x128xf32> to vector<8x32xf32>
    %72 = vector.extract_strided_slice %70 {offsets = [0, 32], sizes = [8, 32], strides = [1, 1]} : vector<8x128xf32> to vector<8x32xf32>
    %73 = vector.extract_strided_slice %70 {offsets = [0, 96], sizes = [8, 32], strides = [1, 1]} : vector<8x128xf32> to vector<8x32xf32>
    %74 = vector.extract_strided_slice %65 {offsets = [0, 64], sizes = [8, 32], strides = [1, 1]} : vector<8x128xf32> to vector<8x32xf32>
    %75 = math.tanh %74 : vector<8x32xf32>
    %76 = arith.mulf %72, %60 : vector<8x32xf32>
    %77 = arith.mulf %71, %75 : vector<8x32xf32>
    %78 = arith.addf %76, %77 : vector<8x32xf32>
    %79 = math.tanh %78 : vector<8x32xf32>
    %80 = arith.mulf %73, %79 : vector<8x32xf32>
    %81 = vector.extract_strided_slice %5 {offsets = [32, 0], sizes = [8, 128], strides = [1, 1]} : vector<64x128xf32> to vector<8x128xf32>
    %cst_17 = arith.constant dense<0.000000e+00> : vector<8x128xf32>
    %82 = tpu.matmul %80, %6, %cst_17 {dimension_numbers = #tpu.dot_dimension_numbers<[1], [0], [0], [1], [0, 0, 1, 1], [], []>} : vector<8x32xf32>, vector<32x128xf32>, vector<8x128xf32> -> vector<8x128xf32>
    %83 = arith.addf %81, %82 : vector<8x128xf32>
    %84 = arith.negf %83 : vector<8x128xf32>
    %85 = math.exp %84 : vector<8x128xf32>
    %cst_18 = arith.constant 1.000000e+00 : f32
    %86 = vector.broadcast %cst_18 : f32 to vector<8x128xf32>
    %87 = arith.addf %86, %85 : vector<8x128xf32>
    %88 = arith.divf %86, %87 : vector<8x128xf32>
    %89 = vector.extract_strided_slice %88 {offsets = [0, 0], sizes = [8, 32], strides = [1, 1]} : vector<8x128xf32> to vector<8x32xf32>
    %90 = vector.extract_strided_slice %88 {offsets = [0, 32], sizes = [8, 32], strides = [1, 1]} : vector<8x128xf32> to vector<8x32xf32>
    %91 = vector.extract_strided_slice %88 {offsets = [0, 96], sizes = [8, 32], strides = [1, 1]} : vector<8x128xf32> to vector<8x32xf32>
    %92 = vector.extract_strided_slice %83 {offsets = [0, 64], sizes = [8, 32], strides = [1, 1]} : vector<8x128xf32> to vector<8x32xf32>
    %93 = math.tanh %92 : vector<8x32xf32>
    %94 = arith.mulf %90, %78 : vector<8x32xf32>
    %95 = arith.mulf %89, %93 : vector<8x32xf32>
    %96 = arith.addf %94, %95 : vector<8x32xf32>
    %97 = math.tanh %96 : vector<8x32xf32>
    %98 = arith.mulf %91, %97 : vector<8x32xf32>
    %99 = vector.extract_strided_slice %5 {offsets = [40, 0], sizes = [8, 128], strides = [1, 1]} : vector<64x128xf32> to vector<8x128xf32>
    %cst_19 = arith.constant dense<0.000000e+00> : vector<8x128xf32>
    %100 = tpu.matmul %98, %6, %cst_19 {dimension_numbers = #tpu.dot_dimension_numbers<[1], [0], [0], [1], [0, 0, 1, 1], [], []>} : vector<8x32xf32>, vector<32x128xf32>, vector<8x128xf32> -> vector<8x128xf32>
    %101 = arith.addf %99, %100 : vector<8x128xf32>
    %102 = arith.negf %101 : vector<8x128xf32>
    %103 = math.exp %102 : vector<8x128xf32>
    %cst_20 = arith.constant 1.000000e+00 : f32
    %104 = vector.broadcast %cst_20 : f32 to vector<8x128xf32>
    %105 = arith.addf %104, %103 : vector<8x128xf32>
    %106 = arith.divf %104, %105 : vector<8x128xf32>
    %107 = vector.extract_strided_slice %106 {offsets = [0, 0], sizes = [8, 32], strides = [1, 1]} : vector<8x128xf32> to vector<8x32xf32>
    %108 = vector.extract_strided_slice %106 {offsets = [0, 32], sizes = [8, 32], strides = [1, 1]} : vector<8x128xf32> to vector<8x32xf32>
    %109 = vector.extract_strided_slice %106 {offsets = [0, 96], sizes = [8, 32], strides = [1, 1]} : vector<8x128xf32> to vector<8x32xf32>
    %110 = vector.extract_strided_slice %101 {offsets = [0, 64], sizes = [8, 32], strides = [1, 1]} : vector<8x128xf32> to vector<8x32xf32>
    %111 = math.tanh %110 : vector<8x32xf32>
    %112 = arith.mulf %108, %96 : vector<8x32xf32>
    %113 = arith.mulf %107, %111 : vector<8x32xf32>
    %114 = arith.addf %112, %113 : vector<8x32xf32>
    %115 = math.tanh %114 : vector<8x32xf32>
    %116 = arith.mulf %109, %115 : vector<8x32xf32>
    %117 = vector.extract_strided_slice %5 {offsets = [48, 0], sizes = [8, 128], strides = [1, 1]} : vector<64x128xf32> to vector<8x128xf32>
    %cst_21 = arith.constant dense<0.000000e+00> : vector<8x128xf32>
    %118 = tpu.matmul %116, %6, %cst_21 {dimension_numbers = #tpu.dot_dimension_numbers<[1], [0], [0], [1], [0, 0, 1, 1], [], []>} : vector<8x32xf32>, vector<32x128xf32>, vector<8x128xf32> -> vector<8x128xf32>
    %119 = arith.addf %117, %118 : vector<8x128xf32>
    %120 = arith.negf %119 : vector<8x128xf32>
    %121 = math.exp %120 : vector<8x128xf32>
    %cst_22 = arith.constant 1.000000e+00 : f32
    %122 = vector.broadcast %cst_22 : f32 to vector<8x128xf32>
    %123 = arith.addf %122, %121 : vector<8x128xf32>
    %124 = arith.divf %122, %123 : vector<8x128xf32>
    %125 = vector.extract_strided_slice %124 {offsets = [0, 0], sizes = [8, 32], strides = [1, 1]} : vector<8x128xf32> to vector<8x32xf32>
    %126 = vector.extract_strided_slice %124 {offsets = [0, 32], sizes = [8, 32], strides = [1, 1]} : vector<8x128xf32> to vector<8x32xf32>
    %127 = vector.extract_strided_slice %124 {offsets = [0, 96], sizes = [8, 32], strides = [1, 1]} : vector<8x128xf32> to vector<8x32xf32>
    %128 = vector.extract_strided_slice %119 {offsets = [0, 64], sizes = [8, 32], strides = [1, 1]} : vector<8x128xf32> to vector<8x32xf32>
    %129 = math.tanh %128 : vector<8x32xf32>
    %130 = arith.mulf %126, %114 : vector<8x32xf32>
    %131 = arith.mulf %125, %129 : vector<8x32xf32>
    %132 = arith.addf %130, %131 : vector<8x32xf32>
    %133 = math.tanh %132 : vector<8x32xf32>
    %134 = arith.mulf %127, %133 : vector<8x32xf32>
    %135 = vector.extract_strided_slice %5 {offsets = [56, 0], sizes = [8, 128], strides = [1, 1]} : vector<64x128xf32> to vector<8x128xf32>
    %cst_23 = arith.constant dense<0.000000e+00> : vector<8x128xf32>
    %136 = tpu.matmul %134, %6, %cst_23 {dimension_numbers = #tpu.dot_dimension_numbers<[1], [0], [0], [1], [0, 0, 1, 1], [], []>} : vector<8x32xf32>, vector<32x128xf32>, vector<8x128xf32> -> vector<8x128xf32>
    %137 = arith.addf %135, %136 : vector<8x128xf32>
    %138 = arith.negf %137 : vector<8x128xf32>
    %139 = math.exp %138 : vector<8x128xf32>
    %cst_24 = arith.constant 1.000000e+00 : f32
    %140 = vector.broadcast %cst_24 : f32 to vector<8x128xf32>
    %141 = arith.addf %140, %139 : vector<8x128xf32>
    %142 = arith.divf %140, %141 : vector<8x128xf32>
    %143 = vector.extract_strided_slice %142 {offsets = [0, 0], sizes = [8, 32], strides = [1, 1]} : vector<8x128xf32> to vector<8x32xf32>
    %144 = vector.extract_strided_slice %142 {offsets = [0, 32], sizes = [8, 32], strides = [1, 1]} : vector<8x128xf32> to vector<8x32xf32>
    %145 = vector.extract_strided_slice %142 {offsets = [0, 96], sizes = [8, 32], strides = [1, 1]} : vector<8x128xf32> to vector<8x32xf32>
    %146 = vector.extract_strided_slice %137 {offsets = [0, 64], sizes = [8, 32], strides = [1, 1]} : vector<8x128xf32> to vector<8x32xf32>
    %147 = math.tanh %146 : vector<8x32xf32>
    %148 = arith.mulf %144, %132 : vector<8x32xf32>
    %149 = arith.mulf %143, %147 : vector<8x32xf32>
    %150 = arith.addf %148, %149 : vector<8x32xf32>
    %151 = math.tanh %150 : vector<8x32xf32>
    %152 = arith.mulf %145, %151 : vector<8x32xf32>
    %cst_25 = arith.constant 0.000000e+00 : f32
    %153 = vector.broadcast %cst_25 : f32 to vector<8x32xf32>
    %154 = arith.maximumf %152, %153 : vector<8x32xf32>
    %c0_26 = arith.constant 0 : index
    %c0_27 = arith.constant 0 : index
    %155 = vector.load %arg5[%c0_26, %c0_27] : memref<32x8xf32, #tpu.memory_space<vmem>>, vector<32x8xf32>
    %cst_28 = arith.constant dense<0.000000e+00> : vector<8x8xf32>
    %156 = tpu.matmul %154, %155, %cst_28 {dimension_numbers = #tpu.dot_dimension_numbers<[1], [0], [0], [1], [0, 0, 1, 1], [], []>} : vector<8x32xf32>, vector<32x8xf32>, vector<8x8xf32> -> vector<8x8xf32>
    %c0_29 = arith.constant 0 : index
    %c0_30 = arith.constant 0 : index
    %157 = vector.load %arg6[%c0_29, %c0_30] : memref<1x8xf32, #tpu.memory_space<vmem>>, vector<1x8xf32>
    %158 = vector.broadcast %157 : vector<1x8xf32> to vector<8x8xf32>
    %159 = arith.addf %156, %158 : vector<8x8xf32>
    %c0_31 = arith.constant 0 : index
    %c0_32 = arith.constant 0 : index
    %160 = vector.load %arg1[%c0_31, %c0_32] : memref<8x16xf32, #tpu.memory_space<vmem>>, vector<8x16xf32>
    %c0_33 = arith.constant 0 : index
    %c0_34 = arith.constant 0 : index
    %161 = vector.load %arg7[%c0_33, %c0_34] : memref<16x32xf32, #tpu.memory_space<vmem>>, vector<16x32xf32>
    %cst_35 = arith.constant dense<0.000000e+00> : vector<8x32xf32>
    %162 = tpu.matmul %160, %161, %cst_35 {dimension_numbers = #tpu.dot_dimension_numbers<[1], [0], [0], [1], [0, 0, 1, 1], [], []>} : vector<8x16xf32>, vector<16x32xf32>, vector<8x32xf32> -> vector<8x32xf32>
    %c0_36 = arith.constant 0 : index
    %c0_37 = arith.constant 0 : index
    %163 = vector.load %arg8[%c0_36, %c0_37] : memref<8x32xf32, #tpu.memory_space<vmem>>, vector<8x32xf32>
    %cst_38 = arith.constant dense<0.000000e+00> : vector<8x32xf32>
    %164 = tpu.matmul %159, %163, %cst_38 {dimension_numbers = #tpu.dot_dimension_numbers<[1], [0], [0], [1], [0, 0, 1, 1], [], []>} : vector<8x8xf32>, vector<8x32xf32>, vector<8x32xf32> -> vector<8x32xf32>
    %165 = arith.addf %162, %164 : vector<8x32xf32>
    %c0_39 = arith.constant 0 : index
    %c0_40 = arith.constant 0 : index
    %166 = vector.load %arg9[%c0_39, %c0_40] : memref<1x32xf32, #tpu.memory_space<vmem>>, vector<1x32xf32>
    %167 = vector.broadcast %166 : vector<1x32xf32> to vector<8x32xf32>
    %168 = arith.addf %165, %167 : vector<8x32xf32>
    %cst_41 = arith.constant 0.000000e+00 : f32
    %169 = vector.broadcast %cst_41 : f32 to vector<8x32xf32>
    %170 = arith.maximumf %168, %169 : vector<8x32xf32>
    %c0_42 = arith.constant 0 : index
    %c0_43 = arith.constant 0 : index
    %171 = vector.load %arg10[%c0_42, %c0_43] : memref<32x32xf32, #tpu.memory_space<vmem>>, vector<32x32xf32>
    %c0_44 = arith.constant 0 : index
    %c0_45 = arith.constant 0 : index
    %172 = vector.load %arg11[%c0_44, %c0_45] : memref<1x32xf32, #tpu.memory_space<vmem>>, vector<1x32xf32>
    %cst_46 = arith.constant dense<0.000000e+00> : vector<8x32xf32>
    %173 = tpu.matmul %170, %171, %cst_46 {dimension_numbers = #tpu.dot_dimension_numbers<[1], [0], [0], [1], [0, 0, 1, 1], [], []>} : vector<8x32xf32>, vector<32x32xf32>, vector<8x32xf32> -> vector<8x32xf32>
    %174 = vector.broadcast %172 : vector<1x32xf32> to vector<8x32xf32>
    %175 = arith.addf %173, %174 : vector<8x32xf32>
    %cst_47 = arith.constant 0.000000e+00 : f32
    %176 = vector.broadcast %cst_47 : f32 to vector<8x32xf32>
    %177 = arith.maximumf %175, %176 : vector<8x32xf32>
    %c0_48 = arith.constant 0 : index
    %c0_49 = arith.constant 0 : index
    %178 = vector.load %arg12[%c0_48, %c0_49] : memref<32x128xf32, #tpu.memory_space<vmem>>, vector<32x128xf32>
    %c0_50 = arith.constant 0 : index
    %c0_51 = arith.constant 0 : index
    %179 = vector.load %arg13[%c0_50, %c0_51] : memref<1x128xf32, #tpu.memory_space<vmem>>, vector<1x128xf32>
    %cst_52 = arith.constant dense<0.000000e+00> : vector<8x128xf32>
    %180 = tpu.matmul %177, %178, %cst_52 {dimension_numbers = #tpu.dot_dimension_numbers<[1], [0], [0], [1], [0, 0, 1, 1], [], []>} : vector<8x32xf32>, vector<32x128xf32>, vector<8x128xf32> -> vector<8x128xf32>
    %181 = vector.broadcast %179 : vector<1x128xf32> to vector<8x128xf32>
    %182 = arith.addf %180, %181 : vector<8x128xf32>
    %c0_53 = arith.constant 0 : index
    %c0_54 = arith.constant 0 : index
    %183 = vector.load %arg14[%c0_53, %c0_54] : memref<8x128xf32, #tpu.memory_space<vmem>>, vector<8x128xf32>
    tpu.vector_store %arg14[%c0_53, %c0_54], %182 {strides = array<i32>} : memref<8x128xf32, #tpu.memory_space<vmem>>, vector<8x128xf32>,
    return
  }
}

</mosaic_0001>

<llo_original>
// kernel: tpu_custom_call.1
$region0: #{tpu_custom_call.1}
  #allocation0 [shape = 'u32[]', space=smem, size = 0x4, offset = 0x4, fixed_abs, tag = 'smem constant byte address 0x4 - core index']
  #allocation1 [shape = 'u32[72,128]{1,0:T(1,128)}', space=vmem, size = 0x9000, scoped, tag = 'internal scratch']
  %s0 = inlined_call_operand.vmem [shape: f32[64,4], index: 0, kind: input, shape index: {}]
  %s1 = inlined_call_operand.hbm [shape: f32[8,16], index: 1, kind: input, shape index: {}]
  %s2 = inlined_call_operand.hbm [shape: f32[4,128], index: 2, kind: input, shape index: {}]
  %s3 = inlined_call_operand.vmem [shape: f32[32,128], index: 3, kind: input, shape index: {}]
  %s4 = inlined_call_operand.vmem [shape: f32[1,128], index: 4, kind: input, shape index: {}]
  %s5 = inlined_call_operand.vmem [shape: f32[32,8], index: 5, kind: input, shape index: {}]
  %s6 = inlined_call_operand.hbm [shape: f32[1,8], index: 6, kind: input, shape index: {}]
  %s7 = inlined_call_operand.vmem [shape: f32[16,32], index: 7, kind: input, shape index: {}]
  %s8 = inlined_call_operand.hbm [shape: f32[8,32], index: 8, kind: input, shape index: {}]
  %s9 = inlined_call_operand.vmem [shape: f32[1,32], index: 9, kind: input, shape index: {}]
  %s10 = inlined_call_operand.vmem [shape: f32[32,32], index: 10, kind: input, shape index: {}]
  %s11 = inlined_call_operand.vmem [shape: f32[1,32], index: 11, kind: input, shape index: {}]
  %s12 = inlined_call_operand.vmem [shape: f32[32,128], index: 12, kind: input, shape index: {}]
  %s13 = inlined_call_operand.vmem [shape: f32[1,128], index: 13, kind: input, shape index: {}]
  %s14 = inlined_call_operand.hbm [shape: f32[8,128], index: 14, kind: output, shape index: {}]
  %s15 = sld [smem:[#allocation0]]
  $region82: #{tpu_custom_call.1} parent=0
    _
  %s17 = ssub.s32 1, %s15
  %s18 = scalar_select 0, %s17, %s15
  $region1: #{tpu_custom_call.1} parent=0
    #allocation2 [shape = 'u8[4096]{0}', space=vmem, size = 0x1000, scoped, tag = 'input window, operand 1, single buffered']
    #allocation3 [shape = 's32[1]{0}', space=sflag, size = 0x4, scoped, tag = 'scoped memory for tpu_custom_call.1']
    #allocation4 [shape = 's32[1]{0}', space=sflag, size = 0x4, scoped, tag = 'scoped memory for tpu_custom_call.1']
    #allocation5 [shape = 'u8[2048]{0}', space=vmem, size = 0x800, scoped, tag = 'input window, operand 2, single buffered']
    #allocation6 [shape = 's32[1]{0}', space=sflag, size = 0x4, scoped, tag = 'scoped memory for tpu_custom_call.1']
    #allocation7 [shape = 'u8[512]{0}', space=vmem, size = 0x400, scoped, tag = 'input window, operand 6, single buffered']
    #allocation8 [shape = 'u8[4096]{0}', space=vmem, size = 0x1000, scoped, tag = 'input window, operand 8, single buffered']
    #allocation9 [shape = 's32[1]{0}', space=sflag, size = 0x4, scoped, tag = 'scoped memory for tpu_custom_call.1']
    #allocation10 [shape = 'u8[4096]{0}', space=vmem, size = 0x1000, scoped, tag = 'output window, operand 0, single buffered']
    %19 = vsyncpa [#allocation3], 0
    %20 = vsyncpa [#allocation6], 0
    %21 = vsyncpa [#allocation9], 0
    %22 = vsyncpa [#allocation4], 0
    // Predicated region
    $region2: #{tpu_custom_call.1} parent=1 // pred_check
      _
    $region3: #{tpu_custom_call.1} parent=1 // pred_check_branch
      %24 = sbr.rel (0) target = $region5
    $region4: #{tpu_custom_call.1} parent=1 // pred_region
      _
    $region5: #{tpu_custom_call.1} parent=1 // pred_fallthru
      _
    // Predicated region
    $region6: #{tpu_custom_call.1} parent=1 // pred_check
      _
    $region7: #{tpu_custom_call.1} parent=1 // pred_check_branch
      %26 = sbr.rel (0) target = $region9
    $region8: #{tpu_custom_call.1} parent=1 // pred_region
      %28 = vsyncadd [#allocation3], 0
      %s30 = sshll.u32 %s1, 4
      %s31 = int_to_ptr.hbm [resolvable:$true] %s30
      %s32 = sshll.u32 [#allocation2], 4
      %s33 = int_to_ptr.vmem [resolvable:$true] %s32
      %35 = dma.hbm_to_vmem [thread:$0]  %s31, 128, %s33, [#allocation3]
    $region9: #{tpu_custom_call.1} parent=1 // pred_fallthru
      _
    // Predicated region
    $region10: #{tpu_custom_call.1} parent=1 // pred_check
      _
    $region11: #{tpu_custom_call.1} parent=1 // pred_check_branch
      %37 = sbr.rel (0) target = $region13
    $region12: #{tpu_custom_call.1} parent=1 // pred_region
      %39 = vsyncadd [#allocation6], 0
      %s41 = sshll.u32 %s2, 4
      %s42 = int_to_ptr.hbm [resolvable:$true] %s41
      %s43 = sshll.u32 [#allocation5], 4
      %s44 = int_to_ptr.vmem [resolvable:$true] %s43
      %46 = dma.hbm_to_vmem [thread:$0]  %s42, 64, %s44, [#allocation6]
    $region13: #{tpu_custom_call.1} parent=1 // pred_fallthru
      _
    // Predicated region
    $region14: #{tpu_custom_call.1} parent=1 // pred_check
      _
    $region15: #{tpu_custom_call.1} parent=1 // pred_check_branch
      %48 = sbr.rel (0) target = $region17
    $region16: #{tpu_custom_call.1} parent=1 // pred_region
      _
    $region17: #{tpu_custom_call.1} parent=1 // pred_fallthru
      _
    // Predicated region
    $region18: #{tpu_custom_call.1} parent=1 // pred_check
      _
    $region19: #{tpu_custom_call.1} parent=1 // pred_check_branch
      %50 = sbr.rel (0) target = $region21
    $region20: #{tpu_custom_call.1} parent=1 // pred_region
      _
    $region21: #{tpu_custom_call.1} parent=1 // pred_fallthru
      _
    // Predicated region
    $region22: #{tpu_custom_call.1} parent=1 // pred_check
      _
    $region23: #{tpu_custom_call.1} parent=1 // pred_check_branch
      %52 = sbr.rel (0) target = $region25
    $region24: #{tpu_custom_call.1} parent=1 // pred_region
      _
    $region25: #{tpu_custom_call.1} parent=1 // pred_fallthru
      _
    // Predicated region
    $region26: #{tpu_custom_call.1} parent=1 // pred_check
      _
    $region27: #{tpu_custom_call.1} parent=1 // pred_check_branch
      %54 = sbr.rel (0) target = $region29
    $region28: #{tpu_custom_call.1} parent=1 // pred_region
      %56 = vsyncadd [#allocation6], 0
      %s58 = sshll.u32 %s6, 4
      %s59 = int_to_ptr.hbm [resolvable:$true] %s58
      %s60 = sshll.u32 [#allocation7], 4
      %s61 = int_to_ptr.vmem [resolvable:$true] %s60
      %63 = dma.hbm_to_vmem [thread:$0]  %s59, 16, %s61, [#allocation6]
    $region29: #{tpu_custom_call.1} parent=1 // pred_fallthru
      _
    // Predicated region
    $region30: #{tpu_custom_call.1} parent=1 // pred_check
      _
    $region31: #{tpu_custom_call.1} parent=1 // pred_check_branch
      %65 = sbr.rel (0) target = $region33
    $region32: #{tpu_custom_call.1} parent=1 // pred_region
      _
    $region33: #{tpu_custom_call.1} parent=1 // pred_fallthru
      _
    // Predicated region
    $region34: #{tpu_custom_call.1} parent=1 // pred_check
      _
    $region35: #{tpu_custom_call.1} parent=1 // pred_check_branch
      %67 = sbr.rel (0) target = $region37
    $region36: #{tpu_custom_call.1} parent=1 // pred_region
      %69 = vsyncadd [#allocation9], 0
      %s71 = sshll.u32 %s8, 4
      %s72 = int_to_ptr.hbm [resolvable:$true] %s71
      %s73 = sshll.u32 [#allocation8], 4
      %s74 = int_to_ptr.vmem [resolvable:$true] %s73
      %76 = dma.hbm_to_vmem [thread:$0]  %s72, 128, %s74, [#allocation9]
    $region37: #{tpu_custom_call.1} parent=1 // pred_fallthru
      _
    // Predicated region
    $region38: #{tpu_custom_call.1} parent=1 // pred_check
      _
    $region39: #{tpu_custom_call.1} parent=1 // pred_check_branch
      %78 = sbr.rel (0) target = $region41
    $region40: #{tpu_custom_call.1} parent=1 // pred_region
      _
    $region41: #{tpu_custom_call.1} parent=1 // pred_fallthru
      _
    // Predicated region
    $region42: #{tpu_custom_call.1} parent=1 // pred_check
      _
    $region43: #{tpu_custom_call.1} parent=1 // pred_check_branch
      %80 = sbr.rel (0) target = $region45
    $region44: #{tpu_custom_call.1} parent=1 // pred_region
      _
    $region45: #{tpu_custom_call.1} parent=1 // pred_fallthru
      _
    // Predicated region
    $region46: #{tpu_custom_call.1} parent=1 // pred_check
      _
    $region47: #{tpu_custom_call.1} parent=1 // pred_check_branch
      %82 = sbr.rel (0) target = $region49
    $region48: #{tpu_custom_call.1} parent=1 // pred_region
      _
    $region49: #{tpu_custom_call.1} parent=1 // pred_fallthru
      _
    // Predicated region
    $region50: #{tpu_custom_call.1} parent=1 // pred_check
      _
    $region51: #{tpu_custom_call.1} parent=1 // pred_check_branch
      %84 = sbr.rel (0) target = $region53
    $region52: #{tpu_custom_call.1} parent=1 // pred_region
      _
    $region53: #{tpu_custom_call.1} parent=1 // pred_fallthru
      _
    // Predicated region
    $region54: #{tpu_custom_call.1} parent=1 // pred_check
      _
    $region55: #{tpu_custom_call.1} parent=1 // pred_check_branch
      %86 = sbr.rel (0) target = $region57
    $region56: #{tpu_custom_call.1} parent=1 // pred_region
      _
    $region57: #{tpu_custom_call.1} parent=1 // pred_fallthru
      _
    // Predicated region
    $region58: #{tpu_custom_call.1} parent=1 // pred_check
      _
    $region59: #{tpu_custom_call.1} parent=1 // pred_check_branch
      %88 = sbr.rel (0) target = $region61
    $region60: #{tpu_custom_call.1} parent=1 // pred_region
      %90 = dma.done [#allocation3], 128
    $region61: #{tpu_custom_call.1} parent=1 // pred_fallthru
      _
    // Predicated region
    $region62: #{tpu_custom_call.1} parent=1 // pred_check
      _
    $region63: #{tpu_custom_call.1} parent=1 // pred_check_branch
      %92 = sbr.rel (0) target = $region65
    $region64: #{tpu_custom_call.1} parent=1 // pred_region
      %94 = dma.done [#allocation6], 64
    $region65: #{tpu_custom_call.1} parent=1 // pred_fallthru
      _
    // Predicated region
    $region66: #{tpu_custom_call.1} parent=1 // pred_check
      _
    $region67: #{tpu_custom_call.1} parent=1 // pred_check_branch
      %96 = sbr.rel (0) target = $region69
    $region68: #{tpu_custom_call.1} parent=1 // pred_region
      %98 = dma.done [#allocation6], 16
    $region69: #{tpu_custom_call.1} parent=1 // pred_fallthru
      _
    // Predicated region
    $region70: #{tpu_custom_call.1} parent=1 // pred_check
      _
    $region71: #{tpu_custom_call.1} parent=1 // pred_check_branch
      %100 = sbr.rel (0) target = $region73
    $region72: #{tpu_custom_call.1} parent=1 // pred_region
      %102 = dma.done [#allocation9], 128
    $region73: #{tpu_custom_call.1} parent=1 // pred_fallthru
      _
    %v103 = vld [vmem:[%s0] sm:$0xff]
    %v104 = vld [vmem:[%s0 + $0x8] sm:$0xff]
    %v105 = vld [vmem:[%s0 + $0x10] sm:$0xff]
    %v106 = vld [vmem:[%s0 + $0x18] sm:$0xff]
    %v107 = vld [vmem:[%s0 + $0x20] sm:$0xff]
    %v108 = vld [vmem:[%s0 + $0x28] sm:$0xff]
    %v109 = vld [vmem:[%s0 + $0x30] sm:$0xff]
    %v110 = vld [vmem:[%s0 + $0x38] sm:$0xff]
    %v111 = vld [vmem:[#allocation5] sm:$0xf]
    %v112 = vld [vmem:[%s4] sm:$0x1]
    %v114 = vperm.slane %v112, 0
    %vm116 = vcmask 31744
    %v118 = vsel %vm116, %v103, 0
    %v121 = vsel %vm116, %v104, 0
    %v124 = vsel %vm116, %v105, 0
    %v127 = vsel %vm116, %v106, 0
    %v130 = vsel %vm116, %v107, 0
    %v133 = vsel %vm116, %v108, 0
    %v136 = vsel %vm116, %v109, 0
    %v139 = vsel %vm116, %v110, 0
    %vm141 = vcmask 1043456
    %v143 = vsel %vm141, %v111, 0
    %145 = vmatpush.msra.mxu0 0.0
    %146 = vmatpush.msra.mxu0 0.0
    %147 = vmatpush.msra.mxu0 0.0
    %148 = vmatpush.msra.mxu0 0.0
    %149 = vmatpush.msra.mxu0 0.0
    %150 = vmatpush.msra.mxu0 0.0
    %151 = vmatpush.msra.mxu0 0.0
    %152 = vmatpush.msra.mxu0 0.0
    %153 = vmatpush.msra.mxu0 0.0
    %154 = vmatpush.msra.mxu0 0.0
    %155 = vmatpush.msra.mxu0 0.0
    %156 = vmatpush.msra.mxu0 0.0
    %157 = vmatpush.msra.mxu0 0.0
    %158 = vmatpush.msra.mxu0 0.0
    %159 = vmatpush.msra.mxu0 0.0
    %160 = vmatpush.msra.mxu0 %v143
    %161 = vmatmul.f32.gmra.mxu0 %v118
    %v162 = vpop.f32.mrf.mxu0
    %v163 = vadd.f32 %v114, %v162
    %164 = vmatmul.f32.gmra.mxu0 %v121
    %v165 = vpop.f32.mrf.mxu0
    %v166 = vadd.f32 %v114, %v165
    %167 = vmatmul.f32.gmra.mxu0 %v124
    %v168 = vpop.f32.mrf.mxu0
    %v169 = vadd.f32 %v114, %v168
    %170 = vmatmul.f32.gmra.mxu0 %v127
    %v171 = vpop.f32.mrf.mxu0
    %v172 = vadd.f32 %v114, %v171
    %173 = vmatmul.f32.gmra.mxu0 %v130
    %v174 = vpop.f32.mrf.mxu0
    %v175 = vadd.f32 %v114, %v174
    %176 = vmatmul.f32.gmra.mxu0 %v133
    %v177 = vpop.f32.mrf.mxu0
    %v178 = vadd.f32 %v114, %v177
    %179 = vmatmul.f32.gmra.mxu0 %v136
    %v180 = vpop.f32.mrf.mxu0
    %v181 = vadd.f32 %v114, %v180
    %182 = vmatmul.f32.gmra.mxu0 %v139
    %v183 = vpop.f32.mrf.mxu0
    %v184 = vadd.f32 %v114, %v183
    %185 = vdwg.mxu0
    %v186 = vld [vmem:[%s3] sm:$0xff]
    %v187 = vld [vmem:[%s3 + $0x8] sm:$0xff]
    %v188 = vld [vmem:[%s3 + $0x10] sm:$0xff]
    %v189 = vld [vmem:[%s3 + $0x18] sm:$0xff]
    %vm190 = vcmask 261120
    %v192 = vsel %vm190, 0.0, 0
    %194 = vmatpush.msra.mxu0 0.0
    %195 = vmatpush.msra.mxu0 0.0
    %196 = vmatpush.msra.mxu0 0.0
    %197 = vmatpush.msra.mxu0 0.0
    %198 = vmatpush.msra.mxu0 0.0
    %199 = vmatpush.msra.mxu0 0.0
    %200 = vmatpush.msra.mxu0 0.0
    %201 = vmatpush.msra.mxu0 0.0
    %202 = vmatpush.msra.mxu0 0.0
    %203 = vmatpush.msra.mxu0 0.0
    %204 = vmatpush.msra.mxu0 0.0
    %205 = vmatpush.msra.mxu0 0.0
    %206 = vmatpush.msra.mxu0 %v189
    %207 = vmatpush.msra.mxu0 %v188
    %208 = vmatpush.msra.mxu0 %v187
    %209 = vmatpush.msra.mxu0 %v186
    %210 = vmatmul.f32.gmra.mxu0 %v192
    %v211 = vpop.f32.mrf.mxu0
    %v212 = vadd.f32 0.0, %v211
    %213 = vdwg.mxu0
    %v214 = vadd.f32 %v163, %v212
    %v215 = vxor.u32 %v214, 2147483648
    %v216 = vmul.f32 %v215, 1.442695
    %v217 = vpow.pop %v216
    %v218 = vadd.f32 %v217, 1.0
    %v219 = vrcp.pop %v218
    %v220 = vmul.f32 %v218, %v219
    %v221 = vsub.f32 1.0, %v220
    %v222 = vmul.f32 %v219, %v221
    %v223 = vadd.f32 %v219, %v222
    %vm224 = vweird.f32 %v218
    %vm225 = vweird.f32 %v219
    %vm226 = vmor %vm224, %vm225
    %v227 = vsel %vm226, %v219, %v223
    %v228 = vand.u32 2147483647, %v218
    %vm229 = vcmp.eq.f32.partialorder %v228, 8.507059e+37
    %v230 = vand.u32 %v218, 2147483648
    %v231 = vor.u32 1.1754944e-38, %v230
    %v232 = vsel %vm229, %v231, %v227
    %v233 = vmul.f32 1.0, %v232
    %v234 = vtanh.pop %v214
    %v235 = vmul.f32 %v233, 0.0
    %237 = vrot.lane.b32.xlu0 %v234, 64
    %v238 = vpop.permute.xlu0 %237
    %v240 = vmul.f32 %v233, %v238
    %242 = vrot.lane.b32.xlu0 %v240, 32
    %v243 = vpop.permute.xlu0 %242
    %v245 = vadd.f32 %v235, %v243
    %v246 = vtanh.pop %v245
    %248 = vrot.lane.b32.xlu0 %v246, 64
    %v249 = vpop.permute.xlu0 %248
    %v251 = vmul.f32 %v233, %v249
    %253 = vrot.lane.b32.xlu0 %v251, 32
    %v254 = vpop.permute.xlu0 %253
    %v255 = vsel %vm190, %v254, 0
    %257 = vmatpush.msra.mxu0 0.0
    %258 = vmatpush.msra.mxu0 0.0
    %259 = vmatpush.msra.mxu0 0.0
    %260 = vmatpush.msra.mxu0 0.0
    %261 = vmatpush.msra.mxu0 0.0
    %262 = vmatpush.msra.mxu0 0.0
    %263 = vmatpush.msra.mxu0 0.0
    %264 = vmatpush.msra.mxu0 0.0
    %265 = vmatpush.msra.mxu0 0.0
    %266 = vmatpush.msra.mxu0 0.0
    %267 = vmatpush.msra.mxu0 0.0
    %268 = vmatpush.msra.mxu0 0.0
    %269 = vmatpush.msra.mxu0 %v189
    %270 = vmatpush.msra.mxu0 %v188
    %271 = vmatpush.msra.mxu0 %v187
    %272 = vmatpush.msra.mxu0 %v186
    %273 = vmatmul.f32.gmra.mxu0 %v255
    %v274 = vpop.f32.mrf.mxu0
    %v275 = vadd.f32 0.0, %v274
    %276 = vdwg.mxu0
    %v277 = vadd.f32 %v166, %v275
    %v278 = vxor.u32 %v277, 2147483648
    %v279 = vmul.f32 %v278, 1.442695
    %v280 = vpow.pop %v279
    %v281 = vadd.f32 %v280, 1.0
    %v282 = vrcp.pop %v281
    %v283 = vmul.f32 %v281, %v282
    %v284 = vsub.f32 1.0, %v283
    %v285 = vmul.f32 %v282, %v284
    %v286 = vadd.f32 %v282, %v285
    %vm287 = vweird.f32 %v281
    %vm288 = vweird.f32 %v282
    %vm289 = vmor %vm287, %vm288
    %v290 = vsel %vm289, %v282, %v286
    %v291 = vand.u32 2147483647, %v281
    %vm292 = vcmp.eq.f32.partialorder %v291, 8.507059e+37
    %v293 = vand.u32 %v281, 2147483648
    %v294 = vor.u32 1.1754944e-38, %v293
    %v295 = vsel %vm292, %v294, %v290
    %v296 = vmul.f32 1.0, %v295
    %v297 = vtanh.pop %v277
    %v298 = vmul.f32 %v296, %v245
    %300 = vrot.lane.b32.xlu0 %v297, 64
    %v301 = vpop.permute.xlu0 %300
    %v303 = vmul.f32 %v296, %v301
    %305 = vrot.lane.b32.xlu0 %v303, 32
    %v306 = vpop.permute.xlu0 %305
    %v308 = vadd.f32 %v298, %v306
    %v309 = vtanh.pop %v308
    %311 = vrot.lane.b32.xlu0 %v309, 64
    %v312 = vpop.permute.xlu0 %311
    %v314 = vmul.f32 %v296, %v312
    %316 = vrot.lane.b32.xlu0 %v314, 32
    %v317 = vpop.permute.xlu0 %316
    %v318 = vsel %vm190, %v317, 0
    %320 = vmatpush.msra.mxu0 0.0
    %321 = vmatpush.msra.mxu0 0.0
    %322 = vmatpush.msra.mxu0 0.0
    %323 = vmatpush.msra.mxu0 0.0
    %324 = vmatpush.msra.mxu0 0.0
    %325 = vmatpush.msra.mxu0 0.0
    %326 = vmatpush.msra.mxu0 0.0
    %327 = vmatpush.msra.mxu0 0.0
    %328 = vmatpush.msra.mxu0 0.0
    %329 = vmatpush.msra.mxu0 0.0
    %330 = vmatpush.msra.mxu0 0.0
    %331 = vmatpush.msra.mxu0 0.0
    %332 = vmatpush.msra.mxu0 %v189
    %333 = vmatpush.msra.mxu0 %v188
    %334 = vmatpush.msra.mxu0 %v187
    %335 = vmatpush.msra.mxu0 %v186
    %336 = vmatmul.f32.gmra.mxu0 %v318
    %v337 = vpop.f32.mrf.mxu0
    %v338 = vadd.f32 0.0, %v337
    %339 = vdwg.mxu0
    %v340 = vadd.f32 %v169, %v338
    %v341 = vxor.u32 %v340, 2147483648
    %v342 = vmul.f32 %v341, 1.442695
    %v343 = vpow.pop %v342
    %v344 = vadd.f32 %v343, 1.0
    %v345 = vrcp.pop %v344
    %v346 = vmul.f32 %v344, %v345
    %v347 = vsub.f32 1.0, %v346
    %v348 = vmul.f32 %v345, %v347
    %v349 = vadd.f32 %v345, %v348
    %vm350 = vweird.f32 %v344
    %vm351 = vweird.f32 %v345
    %vm352 = vmor %vm350, %vm351
    %v353 = vsel %vm352, %v345, %v349
    %v354 = vand.u32 2147483647, %v344
    %vm355 = vcmp.eq.f32.partialorder %v354, 8.507059e+37
    %v356 = vand.u32 %v344, 2147483648
    %v357 = vor.u32 1.1754944e-38, %v356
    %v358 = vsel %vm355, %v357, %v353
    %v359 = vmul.f32 1.0, %v358
    %v360 = vtanh.pop %v340
    %v361 = vmul.f32 %v359, %v308
    %363 = vrot.lane.b32.xlu0 %v360, 64
    %v364 = vpop.permute.xlu0 %363
    %v366 = vmul.f32 %v359, %v364
    %368 = vrot.lane.b32.xlu0 %v366, 32
    %v369 = vpop.permute.xlu0 %368
    %v371 = vadd.f32 %v361, %v369
    %v372 = vtanh.pop %v371
    %374 = vrot.lane.b32.xlu0 %v372, 64
    %v375 = vpop.permute.xlu0 %374
    %v377 = vmul.f32 %v359, %v375
    %379 = vrot.lane.b32.xlu0 %v377, 32
    %v380 = vpop.permute.xlu0 %379
    %v381 = vsel %vm190, %v380, 0
    %383 = vmatpush.msra.mxu0 0.0
    %384 = vmatpush.msra.mxu0 0.0
    %385 = vmatpush.msra.mxu0 0.0
    %386 = vmatpush.msra.mxu0 0.0
    %387 = vmatpush.msra.mxu0 0.0
    %388 = vmatpush.msra.mxu0 0.0
    %389 = vmatpush.msra.mxu0 0.0
    %390 = vmatpush.msra.mxu0 0.0
    %391 = vmatpush.msra.mxu0 0.0
    %392 = vmatpush.msra.mxu0 0.0
    %393 = vmatpush.msra.mxu0 0.0
    %394 = vmatpush.msra.mxu0 0.0
    %395 = vmatpush.msra.mxu0 %v189
    %396 = vmatpush.msra.mxu0 %v188
    %397 = vmatpush.msra.mxu0 %v187
    %398 = vmatpush.msra.mxu0 %v186
    %399 = vmatmul.f32.gmra.mxu0 %v381
    %v400 = vpop.f32.mrf.mxu0
    %v401 = vadd.f32 0.0, %v400
    %402 = vdwg.mxu0
    %v403 = vadd.f32 %v172, %v401
    %v404 = vxor.u32 %v403, 2147483648
    %v405 = vmul.f32 %v404, 1.442695
    %v406 = vpow.pop %v405
    %v407 = vadd.f32 %v406, 1.0
    %v408 = vrcp.pop %v407
    %v409 = vmul.f32 %v407, %v408
    %v410 = vsub.f32 1.0, %v409
    %v411 = vmul.f32 %v408, %v410
    %v412 = vadd.f32 %v408, %v411
    %vm413 = vweird.f32 %v407
    %vm414 = vweird.f32 %v408
    %vm415 = vmor %vm413, %vm414
    %v416 = vsel %vm415, %v408, %v412
    %v417 = vand.u32 2147483647, %v407
    %vm418 = vcmp.eq.f32.partialorder %v417, 8.507059e+37
    %v419 = vand.u32 %v407, 2147483648
    %v420 = vor.u32 1.1754944e-38, %v419
    %v421 = vsel %vm418, %v420, %v416
    %v422 = vmul.f32 1.0, %v421
    %v423 = vtanh.pop %v403
    %v424 = vmul.f32 %v422, %v371
    %426 = vrot.lane.b32.xlu0 %v423, 64
    %v427 = vpop.permute.xlu0 %426
    %v429 = vmul.f32 %v422, %v427
    %431 = vrot.lane.b32.xlu0 %v429, 32
    %v432 = vpop.permute.xlu0 %431
    %v434 = vadd.f32 %v424, %v432
    %v435 = vtanh.pop %v434
    %437 = vrot.lane.b32.xlu0 %v435, 64
    %v438 = vpop.permute.xlu0 %437
    %v440 = vmul.f32 %v422, %v438
    %442 = vrot.lane.b32.xlu0 %v440, 32
    %v443 = vpop.permute.xlu0 %442
    %v444 = vsel %vm190, %v443, 0
    %446 = vmatpush.msra.mxu0 0.0
    %447 = vmatpush.msra.mxu0 0.0
    %448 = vmatpush.msra.mxu0 0.0
    %449 = vmatpush.msra.mxu0 0.0
    %450 = vmatpush.msra.mxu0 0.0
    %451 = vmatpush.msra.mxu0 0.0
    %452 = vmatpush.msra.mxu0 0.0
    %453 = vmatpush.msra.mxu0 0.0
    %454 = vmatpush.msra.mxu0 0.0
    %455 = vmatpush.msra.mxu0 0.0
    %456 = vmatpush.msra.mxu0 0.0
    %457 = vmatpush.msra.mxu0 0.0
    %458 = vmatpush.msra.mxu0 %v189
    %459 = vmatpush.msra.mxu0 %v188
    %460 = vmatpush.msra.mxu0 %v187
    %461 = vmatpush.msra.mxu0 %v186
    %462 = vmatmul.f32.gmra.mxu0 %v444
    %v463 = vpop.f32.mrf.mxu0
    %v464 = vadd.f32 0.0, %v463
    %465 = vdwg.mxu0
    %v466 = vadd.f32 %v175, %v464
    %v467 = vxor.u32 %v466, 2147483648
    %v468 = vmul.f32 %v467, 1.442695
    %v469 = vpow.pop %v468
    %v470 = vadd.f32 %v469, 1.0
    %v471 = vrcp.pop %v470
    %v472 = vmul.f32 %v470, %v471
    %v473 = vsub.f32 1.0, %v472
    %v474 = vmul.f32 %v471, %v473
    %v475 = vadd.f32 %v471, %v474
    %vm476 = vweird.f32 %v470
    %vm477 = vweird.f32 %v471
    %vm478 = vmor %vm476, %vm477
    %v479 = vsel %vm478, %v471, %v475
    %v480 = vand.u32 2147483647, %v470
    %vm481 = vcmp.eq.f32.partialorder %v480, 8.507059e+37
    %v482 = vand.u32 %v470, 2147483648
    %v483 = vor.u32 1.1754944e-38, %v482
    %v484 = vsel %vm481, %v483, %v479
    %v485 = vmul.f32 1.0, %v484
    %v486 = vtanh.pop %v466
    %v487 = vmul.f32 %v485, %v434
    %489 = vrot.lane.b32.xlu0 %v486, 64
    %v490 = vpop.permute.xlu0 %489
    %v492 = vmul.f32 %v485, %v490
    %494 = vrot.lane.b32.xlu0 %v492, 32
    %v495 = vpop.permute.xlu0 %494
    %v497 = vadd.f32 %v487, %v495
    %v498 = vtanh.pop %v497
    %500 = vrot.lane.b32.xlu0 %v498, 64
    %v501 = vpop.permute.xlu0 %500
    %v503 = vmul.f32 %v485, %v501
    %505 = vrot.lane.b32.xlu0 %v503, 32
    %v506 = vpop.permute.xlu0 %505
    %v507 = vsel %vm190, %v506, 0
    %509 = vmatpush.msra.mxu0 0.0
    %510 = vmatpush.msra.mxu0 0.0
    %511 = vmatpush.msra.mxu0 0.0
    %512 = vmatpush.msra.mxu0 0.0
    %513 = vmatpush.msra.mxu0 0.0
    %514 = vmatpush.msra.mxu0 0.0
    %515 = vmatpush.msra.mxu0 0.0
    %516 = vmatpush.msra.mxu0 0.0
    %517 = vmatpush.msra.mxu0 0.0
    %518 = vmatpush.msra.mxu0 0.0
    %519 = vmatpush.msra.mxu0 0.0
    %520 = vmatpush.msra.mxu0 0.0
    %521 = vmatpush.msra.mxu0 %v189
    %522 = vmatpush.msra.mxu0 %v188
    %523 = vmatpush.msra.mxu0 %v187
    %524 = vmatpush.msra.mxu0 %v186
    %525 = vmatmul.f32.gmra.mxu0 %v507
    %v526 = vpop.f32.mrf.mxu0
    %v527 = vadd.f32 0.0, %v526
    %528 = vdwg.mxu0
    %v529 = vadd.f32 %v178, %v527
    %v530 = vxor.u32 %v529, 2147483648
    %v531 = vmul.f32 %v530, 1.442695
    %v532 = vpow.pop %v531
    %v533 = vadd.f32 %v532, 1.0
    %v534 = vrcp.pop %v533
    %v535 = vmul.f32 %v533, %v534
    %v536 = vsub.f32 1.0, %v535
    %v537 = vmul.f32 %v534, %v536
    %v538 = vadd.f32 %v534, %v537
    %vm539 = vweird.f32 %v533
    %vm540 = vweird.f32 %v534
    %vm541 = vmor %vm539, %vm540
    %v542 = vsel %vm541, %v534, %v538
    %v543 = vand.u32 2147483647, %v533
    %vm544 = vcmp.eq.f32.partialorder %v543, 8.507059e+37
    %v545 = vand.u32 %v533, 2147483648
    %v546 = vor.u32 1.1754944e-38, %v545
    %v547 = vsel %vm544, %v546, %v542
    %v548 = vmul.f32 1.0, %v547
    %v549 = vtanh.pop %v529
    %v550 = vmul.f32 %v548, %v497
    %552 = vrot.lane.b32.xlu0 %v549, 64
    %v553 = vpop.permute.xlu0 %552
    %v555 = vmul.f32 %v548, %v553
    %557 = vrot.lane.b32.xlu0 %v555, 32
    %v558 = vpop.permute.xlu0 %557
    %v560 = vadd.f32 %v550, %v558
    %v561 = vtanh.pop %v560
    %563 = vrot.lane.b32.xlu0 %v561, 64
    %v564 = vpop.permute.xlu0 %563
    %v566 = vmul.f32 %v548, %v564
    %568 = vrot.lane.b32.xlu0 %v566, 32
    %v569 = vpop.permute.xlu0 %568
    %v570 = vsel %vm190, %v569, 0
    %572 = vmatpush.msra.mxu0 0.0
    %573 = vmatpush.msra.mxu0 0.0
    %574 = vmatpush.msra.mxu0 0.0
    %575 = vmatpush.msra.mxu0 0.0
    %576 = vmatpush.msra.mxu0 0.0
    %577 = vmatpush.msra.mxu0 0.0
    %578 = vmatpush.msra.mxu0 0.0
    %579 = vmatpush.msra.mxu0 0.0
    %580 = vmatpush.msra.mxu0 0.0
    %581 = vmatpush.msra.mxu0 0.0
    %582 = vmatpush.msra.mxu0 0.0
    %583 = vmatpush.msra.mxu0 0.0
    %584 = vmatpush.msra.mxu0 %v189
    %585 = vmatpush.msra.mxu0 %v188
    %586 = vmatpush.msra.mxu0 %v187
    %587 = vmatpush.msra.mxu0 %v186
    %588 = vmatmul.f32.gmra.mxu0 %v570
    %v589 = vpop.f32.mrf.mxu0
    %v590 = vadd.f32 0.0, %v589
    %591 = vdwg.mxu0
    %v592 = vadd.f32 %v181, %v590
    %v593 = vxor.u32 %v592, 2147483648
    %v594 = vmul.f32 %v593, 1.442695
    %v595 = vpow.pop %v594
    %v596 = vadd.f32 %v595, 1.0
    %v597 = vrcp.pop %v596
    %v598 = vmul.f32 %v596, %v597
    %v599 = vsub.f32 1.0, %v598
    %v600 = vmul.f32 %v597, %v599
    %v601 = vadd.f32 %v597, %v600
    %vm602 = vweird.f32 %v596
    %vm603 = vweird.f32 %v597
    %vm604 = vmor %vm602, %vm603
    %v605 = vsel %vm604, %v597, %v601
    %v606 = vand.u32 2147483647, %v596
    %vm607 = vcmp.eq.f32.partialorder %v606, 8.507059e+37
    %v608 = vand.u32 %v596, 2147483648
    %v609 = vor.u32 1.1754944e-38, %v608
    %v610 = vsel %vm607, %v609, %v605
    %v611 = vmul.f32 1.0, %v610
    %v612 = vtanh.pop %v592
    %v613 = vmul.f32 %v611, %v560
    %615 = vrot.lane.b32.xlu0 %v612, 64
    %v616 = vpop.permute.xlu0 %615
    %v618 = vmul.f32 %v611, %v616
    %620 = vrot.lane.b32.xlu0 %v618, 32
    %v621 = vpop.permute.xlu0 %620
    %v623 = vadd.f32 %v613, %v621
    %v624 = vtanh.pop %v623
    %626 = vrot.lane.b32.xlu0 %v624, 64
    %v627 = vpop.permute.xlu0 %626
    %v629 = vmul.f32 %v611, %v627
    %631 = vrot.lane.b32.xlu0 %v629, 32
    %v632 = vpop.permute.xlu0 %631
    %v633 = vsel %vm190, %v632, 0
    %635 = vmatpush.msra.mxu0 0.0
    %636 = vmatpush.msra.mxu0 0.0
    %637 = vmatpush.msra.mxu0 0.0
    %638 = vmatpush.msra.mxu0 0.0
    %639 = vmatpush.msra.mxu0 0.0
    %640 = vmatpush.msra.mxu0 0.0
    %641 = vmatpush.msra.mxu0 0.0
    %642 = vmatpush.msra.mxu0 0.0
    %643 = vmatpush.msra.mxu0 0.0
    %644 = vmatpush.msra.mxu0 0.0
    %645 = vmatpush.msra.mxu0 0.0
    %646 = vmatpush.msra.mxu0 0.0
    %647 = vmatpush.msra.mxu0 %v189
    %648 = vmatpush.msra.mxu0 %v188
    %649 = vmatpush.msra.mxu0 %v187
    %650 = vmatpush.msra.mxu0 %v186
    %651 = vmatmul.f32.gmra.mxu0 %v633
    %v652 = vpop.f32.mrf.mxu0
    %v653 = vadd.f32 0.0, %v652
    %654 = vdwg.mxu0
    %v655 = vadd.f32 %v184, %v653
    %v656 = vxor.u32 %v655, 2147483648
    %v657 = vmul.f32 %v656, 1.442695
    %v658 = vpow.pop %v657
    %v659 = vadd.f32 %v658, 1.0
    %v660 = vrcp.pop %v659
    %v661 = vmul.f32 %v659, %v660
    %v662 = vsub.f32 1.0, %v661
    %v663 = vmul.f32 %v660, %v662
    %v664 = vadd.f32 %v660, %v663
    %vm665 = vweird.f32 %v659
    %vm666 = vweird.f32 %v660
    %vm667 = vmor %vm665, %vm666
    %v668 = vsel %vm667, %v660, %v664
    %v669 = vand.u32 2147483647, %v659
    %vm670 = vcmp.eq.f32.partialorder %v669, 8.507059e+37
    %v671 = vand.u32 %v659, 2147483648
    %v672 = vor.u32 1.1754944e-38, %v671
    %v673 = vsel %vm670, %v672, %v668
    %v674 = vmul.f32 1.0, %v673
    %v675 = vtanh.pop %v655
    %v676 = vmul.f32 %v674, %v623
    %678 = vrot.lane.b32.xlu0 %v675, 64
    %v679 = vpop.permute.xlu0 %678
    %v681 = vmul.f32 %v674, %v679
    %683 = vrot.lane.b32.xlu0 %v681, 32
    %v684 = vpop.permute.xlu0 %683
    %v686 = vadd.f32 %v676, %v684
    %v687 = vtanh.pop %v686
    %689 = vrot.lane.b32.xlu0 %v687, 64
    %v690 = vpop.permute.xlu0 %689
    %v692 = vmul.f32 %v674, %v690
    %v693 = vmax.f32 %v692, 0.0
    %v694 = vld [vmem:[%s5] sm:$0xff]
    %v695 = vld [vmem:[%s5 + $0x8] sm:$0xff]
    %v696 = vld [vmem:[%s5 + $0x10] sm:$0xff]
    %v697 = vld [vmem:[%s5 + $0x18] sm:$0xff]
    %v698 = vld [vmem:[#allocation7] sm:$0x1]
    %v700 = vperm.slane %v698, 0
    %703 = vrot.lane.b32.xlu0 %v693, 32
    %v704 = vpop.permute.xlu0 %703
    %v705 = vsel %vm190, %v704, 0
    %707 = vmatpush.msra.mxu0 0.0
    %708 = vmatpush.msra.mxu0 0.0
    %709 = vmatpush.msra.mxu0 0.0
    %710 = vmatpush.msra.mxu0 0.0
    %711 = vmatpush.msra.mxu0 0.0
    %712 = vmatpush.msra.mxu0 0.0
    %713 = vmatpush.msra.mxu0 0.0
    %714 = vmatpush.msra.mxu0 0.0
    %715 = vmatpush.msra.mxu0 0.0
    %716 = vmatpush.msra.mxu0 0.0
    %717 = vmatpush.msra.mxu0 0.0
    %718 = vmatpush.msra.mxu0 0.0
    %719 = vmatpush.msra.mxu0 %v697
    %720 = vmatpush.msra.mxu0 %v696
    %721 = vmatpush.msra.mxu0 %v695
    %722 = vmatpush.msra.mxu0 %v694
    %723 = vmatmul.f32.gmra.mxu0 %v705
    %v724 = vpop.f32.mrf.mxu0
    %v725 = vadd.f32 %v700, %v724
    %726 = vdwg.mxu0
    %v727 = vld [vmem:[#allocation2] sm:$0xff]
    %v728 = vld [vmem:[%s7] sm:$0xff]
    %v729 = vld [vmem:[%s7 + $0x8] sm:$0xff]
    %v730 = vld [vmem:[#allocation8] sm:$0xff]
    %vm731 = vcmask 64512
    %v733 = vsel %vm731, %v725, 0
    %735 = vmatpush.msra.mxu0 0.0
    %736 = vmatpush.msra.mxu0 0.0
    %737 = vmatpush.msra.mxu0 0.0
    %738 = vmatpush.msra.mxu0 0.0
    %739 = vmatpush.msra.mxu0 0.0
    %740 = vmatpush.msra.mxu0 0.0
    %741 = vmatpush.msra.mxu0 0.0
    %742 = vmatpush.msra.mxu0 0.0
    %743 = vmatpush.msra.mxu0 0.0
    %744 = vmatpush.msra.mxu0 0.0
    %745 = vmatpush.msra.mxu0 0.0
    %746 = vmatpush.msra.mxu0 0.0
    %747 = vmatpush.msra.mxu0 0.0
    %748 = vmatpush.msra.mxu0 0.0
    %749 = vmatpush.msra.mxu0 0.0
    %750 = vmatpush.msra.mxu0 %v730
    %751 = vmatmul.f32.gmra.mxu0 %v733
    %v752 = vpop.f32.mrf.mxu0
    %v753 = vadd.f32 0.0, %v752
    %754 = vdwg.mxu0
    %vm755 = vcmask 130048
    %v757 = vsel %vm755, %v727, 0
    %759 = vmatpush.msra.mxu0 0.0
    %760 = vmatpush.msra.mxu0 0.0
    %761 = vmatpush.msra.mxu0 0.0
    %762 = vmatpush.msra.mxu0 0.0
    %763 = vmatpush.msra.mxu0 0.0
    %764 = vmatpush.msra.mxu0 0.0
    %765 = vmatpush.msra.mxu0 0.0
    %766 = vmatpush.msra.mxu0 0.0
    %767 = vmatpush.msra.mxu0 0.0
    %768 = vmatpush.msra.mxu0 0.0
    %769 = vmatpush.msra.mxu0 0.0
    %770 = vmatpush.msra.mxu0 0.0
    %771 = vmatpush.msra.mxu0 0.0
    %772 = vmatpush.msra.mxu0 0.0
    %773 = vmatpush.msra.mxu0 %v729
    %774 = vmatpush.msra.mxu0 %v728
    %775 = vmatmul.f32.gmra.mxu0 %v757
    %v776 = vpop.f32.mrf.mxu0
    %v777 = vadd.f32 %v753, %v776
    %778 = vdwg.mxu0
    %v779 = vld [vmem:[%s9] sm:$0x1]
    %v781 = vperm.slane %v779, 0
    %v783 = vadd.f32 %v777, %v781
    %v784 = vmax.f32 %v783, 0.0
    %v785 = vld [vmem:[%s10] sm:$0xff]
    %v786 = vld [vmem:[%s10 + $0x8] sm:$0xff]
    %v787 = vld [vmem:[%s10 + $0x10] sm:$0xff]
    %v788 = vld [vmem:[%s10 + $0x18] sm:$0xff]
    %v789 = vld [vmem:[%s11] sm:$0x1]
    %v791 = vperm.slane %v789, 0
    %v794 = vsel %vm190, %v784, 0
    %796 = vmatpush.msra.mxu0 0.0
    %797 = vmatpush.msra.mxu0 0.0
    %798 = vmatpush.msra.mxu0 0.0
    %799 = vmatpush.msra.mxu0 0.0
    %800 = vmatpush.msra.mxu0 0.0
    %801 = vmatpush.msra.mxu0 0.0
    %802 = vmatpush.msra.mxu0 0.0
    %803 = vmatpush.msra.mxu0 0.0
    %804 = vmatpush.msra.mxu0 0.0
    %805 = vmatpush.msra.mxu0 0.0
    %806 = vmatpush.msra.mxu0 0.0
    %807 = vmatpush.msra.mxu0 0.0
    %808 = vmatpush.msra.mxu0 %v788
    %809 = vmatpush.msra.mxu0 %v787
    %810 = vmatpush.msra.mxu0 %v786
    %811 = vmatpush.msra.mxu0 %v785
    %812 = vmatmul.f32.gmra.mxu0 %v794
    %v813 = vpop.f32.mrf.mxu0
    %v814 = vadd.f32 %v791, %v813
    %815 = vdwg.mxu0
    %v816 = vmax.f32 %v814, 0.0
    %v817 = vld [vmem:[%s12] sm:$0xff]
    %v818 = vld [vmem:[%s12 + $0x8] sm:$0xff]
    %v819 = vld [vmem:[%s12 + $0x10] sm:$0xff]
    %v820 = vld [vmem:[%s12 + $0x18] sm:$0xff]
    %v821 = vld [vmem:[%s13] sm:$0x1]
    %v823 = vperm.slane %v821, 0
    %v826 = vsel %vm190, %v816, 0
    %828 = vmatpush.msra.mxu0 0.0
    %829 = vmatpush.msra.mxu0 0.0
    %830 = vmatpush.msra.mxu0 0.0
    %831 = vmatpush.msra.mxu0 0.0
    %832 = vmatpush.msra.mxu0 0.0
    %833 = vmatpush.msra.mxu0 0.0
    %834 = vmatpush.msra.mxu0 0.0
    %835 = vmatpush.msra.mxu0 0.0
    %836 = vmatpush.msra.mxu0 0.0
    %837 = vmatpush.msra.mxu0 0.0
    %838 = vmatpush.msra.mxu0 0.0
    %839 = vmatpush.msra.mxu0 0.0
    %840 = vmatpush.msra.mxu0 %v820
    %841 = vmatpush.msra.mxu0 %v819
    %842 = vmatpush.msra.mxu0 %v818
    %843 = vmatpush.msra.mxu0 %v817
    %844 = vmatmul.f32.gmra.mxu0 %v826
    %v845 = vpop.f32.mrf.mxu0
    %v846 = vadd.f32 %v823, %v845
    %847 = vdwg.mxu0
    %848 = vst [vmem:[#allocation10] sm:$0xff] %v846
    // Predicated region
    $region74: #{tpu_custom_call.1} parent=1 // pred_check
      _
    $region75: #{tpu_custom_call.1} parent=1 // pred_check_branch
      %850 = sbr.rel (0) target = $region77
    $region76: #{tpu_custom_call.1} parent=1 // pred_region
      %852 = vsyncadd [#allocation4], 0
      %s854 = sshll.u32 [#allocation10], 4
      %s855 = int_to_ptr.vmem [resolvable:$true] %s854
      %s856 = sshll.u32 %s14, 4
      %s857 = int_to_ptr.hbm [resolvable:$true] %s856
      %859 = dma.vmem_to_hbm [thread:$0]  %s855, 128, %s857, [#allocation4]
    $region77: #{tpu_custom_call.1} parent=1 // pred_fallthru
      _
    // Predicated region
    $region78: #{tpu_custom_call.1} parent=1 // pred_check
      _
    $region79: #{tpu_custom_call.1} parent=1 // pred_check_branch
      %861 = sbr.rel (0) target = $region81
    $region80: #{tpu_custom_call.1} parent=1 // pred_region
      %863 = dma.done [#allocation4], 128
    $region81: #{tpu_custom_call.1} parent=1 // pred_fallthru
      _
    %864 = vsyncpa [#allocation3], 1
    %865 = vsyncpa [#allocation6], 1
    %866 = vsyncpa [#allocation9], 1
    %867 = vsyncpa [#allocation4], 1

</llo_original>
